<compile_context>
chip_gen: v5e
topology: v5e:2x2
jax: 0.10.0
libtpu: 0.0.40
codegen_flags: <defaults>
</compile_context>

<pallas_src>
import functools
import math

import jax
import jax.numpy as jnp
from jax.experimental import pallas as pl
from jax.experimental.pallas import tpu as pltpu

_MiB = 1024 * 1024
_TARGET_TILE_HBM_BYTES = 16 * _MiB   # real x bytes streamed per grid step


def _diag_linear_kernel(x_ref, w_ref, b_ref, o_ref, *, has_bias):
    # x_ref: (TM, DK) packed input tile; w_ref: (DK, K) block-diagonal weight
    # (VMEM-resident); b_ref: (1,) SMEM scalar bias; o_ref: (TM, K).
    y = jnp.dot(
        x_ref[...],
        w_ref[...],
        preferred_element_type=jnp.float32,
        precision=jax.lax.Precision.HIGHEST,
    )
    if has_bias:
        y = y + b_ref[0]
    o_ref[...] = y.astype(o_ref.dtype)


def _vmem_capacity_bytes():
    try:
        return int(pltpu.get_tpu_info().vmem_capacity_bytes)
    except Exception:
        return 64 * _MiB   # conservative fallback (safe on v5e/v6e/v7x)


def _choose_tiling(M, dk, itemsize, vmem_cap, rows_per_tile=None):
    """Rows of (packed) x per grid step, and the number of grid steps."""
    lane_dk = pl.cdiv(dk, 128) * 128
    vmem_row = lane_dk * itemsize        # bytes one row occupies in VMEM
    hbm_row = dk * itemsize              # real HBM bytes per row

    if rows_per_tile is not None:        # test / tuning override
        tm = min(int(rows_per_tile), M)
        if tm < M:
            tm = max(8, (tm // 8) * 8)
        return tm, pl.cdiv(M, tm)

    # Double-buffered x tiles get ~70% of VMEM (weight/output/scratch the rest).
    per_tile_vmem = max(vmem_row, (7 * vmem_cap // 10) // 2)
    rows_vmem = max(8, per_tile_vmem // vmem_row)
    rows_target = max(8, _TARGET_TILE_HBM_BYTES // hbm_row)
    tm = min(rows_vmem, rows_target)

    # Megacore: guarantee >= 2 (>= 8 for big batches) grid steps on sizeable
    # problems so both v7x TensorCores get work on the "parallel" axis.
    total_bytes = M * hbm_row
    if total_bytes <= 8 * _MiB:
        min_tiles = 1
    elif total_bytes <= 64 * _MiB:
        min_tiles = 2
    else:
        min_tiles = 8

    if tm >= M and min_tiles == 1:
        return M, 1                      # single full-extent block

    tm = min(tm, pl.cdiv(M, min_tiles))
    tm = max(8, (tm // 8) * 8)
    return tm, pl.cdiv(M, tm)


def diagonal_linear_forward(x, wplus, wminus, L, b=None, rows_per_tile=None):
    """x: (N, d); wplus/wminus: (d,); b: None or (1,)  ->  (N,)."""
    N, d = x.shape
    itemsize = jnp.dtype(x.dtype).itemsize

    # Hoisted weight prep: fold the 1/sqrt(d) input scale into the tiny (d,)
    # effective weight so the kernel does no per-tile rescaling or **L.
    w_eff = (
        wplus.astype(jnp.float32) ** L - wminus.astype(jnp.float32) ** L
    ) * (1.0 / math.sqrt(d))

    # Lane packing: view x as (N/k, k*d) so small-d rows fill all 128 lanes.
    if d < 128 and 128 % d == 0 and N % (128 // d) == 0:
        k = 128 // d
    else:
        k = 1
    M, dk = N // k, d * k
    x_view = x.reshape(M, dk)            # contiguous row-major: free bitcast

    if k == 1:
        w_mat = w_eff.reshape(d, 1)
    else:
        # Block-diagonal (k*d, k): column j holds w_eff in rows [j*d, (j+1)*d).
        w_mat = (
            jnp.eye(k, dtype=jnp.float32)[:, None, :] * w_eff[None, :, None]
        ).reshape(dk, k)

    has_bias = b is not None
    bias = (
        b.reshape(1).astype(jnp.float32)
        if has_bias
        else jnp.zeros((1,), jnp.float32)
    )

    vmem_cap = _vmem_capacity_bytes()
    tm, num_tiles = _choose_tiling(M, dk, itemsize, vmem_cap, rows_per_tile)
    out_rows = num_tiles * tm            # >= M; garbage tail sliced off below

    cost = pl.CostEstimate(
        flops=2 * N * d,
        transcendentals=0,
        bytes_accessed=N * d * itemsize + N * itemsize + dk * k * 4,
    )

    out = pl.pallas_call(
        functools.partial(_diag_linear_kernel, has_bias=has_bias),
        out_shape=jax.ShapeDtypeStruct((out_rows, k), x.dtype),
        grid=(num_tiles,),
        in_specs=[
            pl.BlockSpec((tm, dk), lambda i: (i, 0)),   # streamed batch tiles
            pl.BlockSpec((dk, k), lambda i: (0, 0)),    # resident weight block
            pl.BlockSpec(memory_space=pltpu.MemorySpace.SMEM),  # scalar bias
        ],
        out_specs=pl.BlockSpec((tm, k), lambda i: (i, 0)),
        compiler_params=pltpu.CompilerParams(
            dimension_semantics=("parallel",),          # shard tiles across TCs
            vmem_limit_bytes=int(0.8 * vmem_cap),
        ),
        cost_estimate=cost,
    )(x_view, w_mat, bias)

    # Row-major flatten of (rows, k) restores the original batch order; rows
    # past M (ragged last tile) land after index N and are sliced away.
    return out.reshape(-1)[:N]


if __name__ == "__main__":
    key = jax.random.PRNGKey(0)
    (k_x1, k_wp, k_wm, k_b, k_x2, k_wp3, k_wm3, k_x3) = jax.random.split(key, 8)

    d, L = 32, 3
    Wplus = jax.random.normal(k_wp, (d,), dtype=jnp.float32)
    Wminus = jax.random.normal(k_wm, (d,), dtype=jnp.float32)
    w_full = Wplus ** L - Wminus ** L

    # Case 1: module default (bias=False), tiny batch -> packed single-tile path.
    N1 = 8
    x1 = jax.random.normal(k_x1, (N1, d), dtype=jnp.float32)
    y1 = jax.block_until_ready(diagonal_linear_forward(x1, Wplus, Wminus, L))
    y1_ref = (x1 / d ** 0.5) @ w_full
    assert y1.shape == (N1,)
    assert jnp.allclose(y1, y1_ref, atol=1e-4, rtol=1e-4), (y1, y1_ref)

    # Case 2: bias=True, N=300 -> packed multi-tile path with a ragged last
    # block and no input padding (rows_per_tile forced small so the test is tiny).
    N2 = 300
    x2 = jax.random.normal(k_x2, (N2, d), dtype=jnp.float32)
    b = jax.random.normal(k_b, (1,), dtype=jnp.float32)
    y2 = jax.block_until_ready(
        diagonal_linear_forward(x2, Wplus, Wminus, L, b=b, rows_per_tile=16))
    y2_ref = (x2 / d ** 0.5) @ w_full + b
    assert y2.shape == (N2,)
    assert jnp.allclose(y2, y2_ref, atol=1e-4, rtol=1e-4), (y2, y2_ref)

    # Case 3: d that does not divide 128 -> unpacked (k=1) MXU matvec path.
    d3, N3 = 48, 40
    Wp3 = jax.random.normal(k_wp3, (d3,), dtype=jnp.float32)
    Wm3 = jax.random.normal(k_wm3, (d3,), dtype=jnp.float32)
    x3 = jax.random.normal(k_x3, (N3, d3), dtype=jnp.float32)
    y3 = jax.block_until_ready(diagonal_linear_forward(x3, Wp3, Wm3, L, b=b))
    y3_ref = (x3 / d3 ** 0.5) @ (Wp3 ** L - Wm3 ** L) + b
    assert y3.shape == (N3,)
    assert jnp.allclose(y3, y3_ref, atol=1e-4, rtol=1e-4), (y3, y3_ref)

    print("KERNEL_OK")
</pallas_src>

<mosaic_0001>
module attributes {stable_mosaic.version = 11 : i64} {
  func.func @_diag_linear_kernel(%arg0: i32, %arg1: memref<2x128xf32, #tpu.memory_space<vmem>>, %arg2: memref<128x4xf32, #tpu.memory_space<vmem>>, %arg3: memref<1xf32, #tpu.memory_space<smem>>, %arg4: memref<2x4xf32, #tpu.memory_space<vmem>>) attributes {dimension_semantics = [#tpu.dimension_semantics<parallel>], iteration_bounds = array<i64: 1>, scalar_prefetch = 0 : i64, scratch_operands = 0 : i64, tpu.core_type = #tpu.core_type<tc>, window_params = [{transform_indices = @transform_0, window_bounds = array<i64: 2, 128>}, {pipeline_mode = #tpu.pipeline_mode<synchronous>, transform_indices = @transform_1, window_bounds = array<i64: 128, 4>}, {transform_indices = @transform_2, window_bounds = array<i64: 1>}, {transform_indices = @transform_3, window_bounds = array<i64: 2, 4>}]} {
    %c0 = arith.constant 0 : index
    %c0_0 = arith.constant 0 : index
    %0 = vector.load %arg1[%c0, %c0_0] : memref<2x128xf32, #tpu.memory_space<vmem>>, vector<2x128xf32>
    %c0_1 = arith.constant 0 : index
    %c0_2 = arith.constant 0 : index
    %1 = vector.load %arg2[%c0_1, %c0_2] : memref<128x4xf32, #tpu.memory_space<vmem>>, vector<128x4xf32>
    %cst = arith.constant dense<0.000000e+00> : vector<2x4xf32>
    %2 = tpu.matmul %0, %1, %cst {dimension_numbers = #tpu.dot_dimension_numbers<[1], [0], [0], [1], [0, 0, 1, 1], [], []>, precision = #tpu.contract_precision<fp32>} : vector<2x128xf32>, vector<128x4xf32>, vector<2x4xf32> -> vector<2x4xf32>
    %c0_3 = arith.constant 0 : index
    %c0_4 = arith.constant 0 : index
    %3 = vector.load %arg4[%c0_3, %c0_4] : memref<2x4xf32, #tpu.memory_space<vmem>>, vector<2x4xf32>
    tpu.vector_store %arg4[%c0_3, %c0_4], %2 {strides = array<i32>} : memref<2x4xf32, #tpu.memory_space<vmem>>, vector<2x4xf32>,
    return
  }
  func.func @transform_0(%arg0: i32) -> (i32, i32) {
    %c0_i32 = arith.constant 0 : i32
    %c0_i32_0 = arith.constant 0 : i32
    return %arg0, %c0_i32 : i32, i32
  }
  func.func @transform_1(%arg0: i32) -> (i32, i32) {
    %c0_i32 = arith.constant 0 : i32
    %c0_i32_0 = arith.constant 0 : i32
    %c0_i32_1 = arith.constant 0 : i32
    return %c0_i32, %c0_i32_0 : i32, i32
  }
  func.func @transform_2(%arg0: i32) -> i32 {
    %c0_i32 = arith.constant 0 : i32
    %c0_i32_0 = arith.constant 0 : i32
    return %c0_i32 : i32
  }
  func.func @transform_3(%arg0: i32) -> (i32, i32) {
    %c0_i32 = arith.constant 0 : i32
    %c0_i32_0 = arith.constant 0 : i32
    return %arg0, %c0_i32 : i32, i32
  }
}

</mosaic_0001>

<llo_original>
// kernel: tpu_custom_call.1
$region0: #{tpu_custom_call.1}
  #allocation0 [shape = 'u32[]', space=smem, size = 0x4, offset = 0x4, fixed_abs, tag = 'smem constant byte address 0x4 - core index']
  #allocation1 [shape = 'u32[72,128]{1,0:T(1,128)}', space=vmem, size = 0x9000, scoped, tag = 'internal scratch']
  #allocation2 [shape = 'f32[1]{0:T(128)S(6)}', space=smem, size = 0x200, scoped, tag = 'scoped memory for tpu_custom_call.1']
  %s0 = inlined_call_operand.vmem [shape: f32[2,128], index: 0, kind: input, shape index: {}]
  %s1 = inlined_call_operand.vmem [shape: f32[128,4], index: 1, kind: input, shape index: {}]
  %s2 = inlined_call_operand.<no memory space> [shape: f32[1], index: 2, kind: input, shape index: {}]
  %s3 = inlined_call_operand.hbm [shape: f32[2,4], index: 3, kind: output, shape index: {}]
  %s4 = sld [smem:[#allocation0]]
  $region22: #{tpu_custom_call.1} parent=0
    _
  %s6 = ssub.s32 1, %s4
  %s7 = scalar_select 0, %s6, %s4
  %8 = sst [smem:[#allocation2]] %s2
  $region1: #{tpu_custom_call.1} parent=0
    #allocation3 [shape = 'u8[1024]{0}', space=vmem, size = 0x400, scoped, tag = 'output window, operand 0, single buffered']
    #allocation4 [shape = 's32[1]{0}', space=sflag, size = 0x4, scoped, tag = 'scoped memory for tpu_custom_call.1']
    %9 = vsyncpa [#allocation4], 0
    // Predicated region
    $region2: #{tpu_custom_call.1} parent=1 // pred_check
      _
    $region3: #{tpu_custom_call.1} parent=1 // pred_check_branch
      %11 = sbr.rel (0) target = $region5
    $region4: #{tpu_custom_call.1} parent=1 // pred_region
      _
    $region5: #{tpu_custom_call.1} parent=1 // pred_fallthru
      _
    // Predicated region
    $region6: #{tpu_custom_call.1} parent=1 // pred_check
      _
    $region7: #{tpu_custom_call.1} parent=1 // pred_check_branch
      %13 = sbr.rel (0) target = $region9
    $region8: #{tpu_custom_call.1} parent=1 // pred_region
      _
    $region9: #{tpu_custom_call.1} parent=1 // pred_fallthru
      _
    // Predicated region
    $region10: #{tpu_custom_call.1} parent=1 // pred_check
      _
    $region11: #{tpu_custom_call.1} parent=1 // pred_check_branch
      %15 = sbr.rel (0) target = $region13
    $region12: #{tpu_custom_call.1} parent=1 // pred_region
      _
    $region13: #{tpu_custom_call.1} parent=1 // pred_fallthru
      _
    %v16 = vld [vmem:[%s0] sm:$0x3]
    %v17 = vld [vmem:[%s1] sm:$0xff]
    %v18 = vld [vmem:[%s1 + $0x8] sm:$0xff]
    %v19 = vld [vmem:[%s1 + $0x10] sm:$0xff]
    %v20 = vld [vmem:[%s1 + $0x18] sm:$0xff]
    %v21 = vld [vmem:[%s1 + $0x20] sm:$0xff]
    %v22 = vld [vmem:[%s1 + $0x28] sm:$0xff]
    %v23 = vld [vmem:[%s1 + $0x30] sm:$0xff]
    %v24 = vld [vmem:[%s1 + $0x38] sm:$0xff]
    %v25 = vld [vmem:[%s1 + $0x40] sm:$0xff]
    %v26 = vld [vmem:[%s1 + $0x48] sm:$0xff]
    %v27 = vld [vmem:[%s1 + $0x50] sm:$0xff]
    %v28 = vld [vmem:[%s1 + $0x58] sm:$0xff]
    %v29 = vld [vmem:[%s1 + $0x60] sm:$0xff]
    %v30 = vld [vmem:[%s1 + $0x68] sm:$0xff]
    %v31 = vld [vmem:[%s1 + $0x70] sm:$0xff]
    %v32 = vld [vmem:[%s1 + $0x78] sm:$0xff]
    %v33 = vand.u32 %v32, 4294901760
    %34 = vmatpush.msra.mxu0 %v33
    %v35 = vand.u32 %v31, 4294901760
    %36 = vmatpush.msra.mxu0 %v35
    %v37 = vand.u32 %v30, 4294901760
    %38 = vmatpush.msra.mxu0 %v37
    %v39 = vand.u32 %v29, 4294901760
    %40 = vmatpush.msra.mxu0 %v39
    %v41 = vand.u32 %v28, 4294901760
    %42 = vmatpush.msra.mxu0 %v41
    %v43 = vand.u32 %v27, 4294901760
    %44 = vmatpush.msra.mxu0 %v43
    %v45 = vand.u32 %v26, 4294901760
    %46 = vmatpush.msra.mxu0 %v45
    %v47 = vand.u32 %v25, 4294901760
    %48 = vmatpush.msra.mxu0 %v47
    %v49 = vand.u32 %v24, 4294901760
    %50 = vmatpush.msra.mxu0 %v49
    %v51 = vand.u32 %v23, 4294901760
    %52 = vmatpush.msra.mxu0 %v51
    %v53 = vand.u32 %v22, 4294901760
    %54 = vmatpush.msra.mxu0 %v53
    %v55 = vand.u32 %v21, 4294901760
    %56 = vmatpush.msra.mxu0 %v55
    %v57 = vand.u32 %v20, 4294901760
    %58 = vmatpush.msra.mxu0 %v57
    %v59 = vand.u32 %v19, 4294901760
    %60 = vmatpush.msra.mxu0 %v59
    %v61 = vand.u32 %v18, 4294901760
    %62 = vmatpush.msra.mxu0 %v61
    %v63 = vand.u32 %v17, 4294901760
    %64 = vmatpush.msra.mxu0 %v63
    %v65 = vand.u32 %v16, 4294901760
    %v66 = vsub.f32 %v16, %v65
    %v67 = vand.u32 %v66, 4294901760
    %v68 = vsub.f32 %v66, %v67
    %v69 = vand.u32 %v68, 4294901760
    %70 = vmatmul.f32.gmra.mxu0 %v69
    %v71 = vpop.f32.mrf.mxu0
    %v72 = vadd.f32 0.0, %v71
    %73 = vdwg.mxu0
    %v74 = vand.u32 %v32, 4294901760
    %v75 = vsub.f32 %v32, %v74
    %v76 = vand.u32 %v75, 4294901760
    %v77 = vsub.f32 %v75, %v76
    %v78 = vand.u32 %v77, 4294901760
    %79 = vmatpush.msra.mxu0 %v78
    %v80 = vand.u32 %v31, 4294901760
    %v81 = vsub.f32 %v31, %v80
    %v82 = vand.u32 %v81, 4294901760
    %v83 = vsub.f32 %v81, %v82
    %v84 = vand.u32 %v83, 4294901760
    %85 = vmatpush.msra.mxu0 %v84
    %v86 = vand.u32 %v30, 4294901760
    %v87 = vsub.f32 %v30, %v86
    %v88 = vand.u32 %v87, 4294901760
    %v89 = vsub.f32 %v87, %v88
    %v90 = vand.u32 %v89, 4294901760
    %91 = vmatpush.msra.mxu0 %v90
    %v92 = vand.u32 %v29, 4294901760
    %v93 = vsub.f32 %v29, %v92
    %v94 = vand.u32 %v93, 4294901760
    %v95 = vsub.f32 %v93, %v94
    %v96 = vand.u32 %v95, 4294901760
    %97 = vmatpush.msra.mxu0 %v96
    %v98 = vand.u32 %v28, 4294901760
    %v99 = vsub.f32 %v28, %v98
    %v100 = vand.u32 %v99, 4294901760
    %v101 = vsub.f32 %v99, %v100
    %v102 = vand.u32 %v101, 4294901760
    %103 = vmatpush.msra.mxu0 %v102
    %v104 = vand.u32 %v27, 4294901760
    %v105 = vsub.f32 %v27, %v104
    %v106 = vand.u32 %v105, 4294901760
    %v107 = vsub.f32 %v105, %v106
    %v108 = vand.u32 %v107, 4294901760
    %109 = vmatpush.msra.mxu0 %v108
    %v110 = vand.u32 %v26, 4294901760
    %v111 = vsub.f32 %v26, %v110
    %v112 = vand.u32 %v111, 4294901760
    %v113 = vsub.f32 %v111, %v112
    %v114 = vand.u32 %v113, 4294901760
    %115 = vmatpush.msra.mxu0 %v114
    %v116 = vand.u32 %v25, 4294901760
    %v117 = vsub.f32 %v25, %v116
    %v118 = vand.u32 %v117, 4294901760
    %v119 = vsub.f32 %v117, %v118
    %v120 = vand.u32 %v119, 4294901760
    %121 = vmatpush.msra.mxu0 %v120
    %v122 = vand.u32 %v24, 4294901760
    %v123 = vsub.f32 %v24, %v122
    %v124 = vand.u32 %v123, 4294901760
    %v125 = vsub.f32 %v123, %v124
    %v126 = vand.u32 %v125, 4294901760
    %127 = vmatpush.msra.mxu0 %v126
    %v128 = vand.u32 %v23, 4294901760
    %v129 = vsub.f32 %v23, %v128
    %v130 = vand.u32 %v129, 4294901760
    %v131 = vsub.f32 %v129, %v130
    %v132 = vand.u32 %v131, 4294901760
    %133 = vmatpush.msra.mxu0 %v132
    %v134 = vand.u32 %v22, 4294901760
    %v135 = vsub.f32 %v22, %v134
    %v136 = vand.u32 %v135, 4294901760
    %v137 = vsub.f32 %v135, %v136
    %v138 = vand.u32 %v137, 4294901760
    %139 = vmatpush.msra.mxu0 %v138
    %v140 = vand.u32 %v21, 4294901760
    %v141 = vsub.f32 %v21, %v140
    %v142 = vand.u32 %v141, 4294901760
    %v143 = vsub.f32 %v141, %v142
    %v144 = vand.u32 %v143, 4294901760
    %145 = vmatpush.msra.mxu0 %v144
    %v146 = vand.u32 %v20, 4294901760
    %v147 = vsub.f32 %v20, %v146
    %v148 = vand.u32 %v147, 4294901760
    %v149 = vsub.f32 %v147, %v148
    %v150 = vand.u32 %v149, 4294901760
    %151 = vmatpush.msra.mxu0 %v150
    %v152 = vand.u32 %v19, 4294901760
    %v153 = vsub.f32 %v19, %v152
    %v154 = vand.u32 %v153, 4294901760
    %v155 = vsub.f32 %v153, %v154
    %v156 = vand.u32 %v155, 4294901760
    %157 = vmatpush.msra.mxu0 %v156
    %v158 = vand.u32 %v18, 4294901760
    %v159 = vsub.f32 %v18, %v158
    %v160 = vand.u32 %v159, 4294901760
    %v161 = vsub.f32 %v159, %v160
    %v162 = vand.u32 %v161, 4294901760
    %163 = vmatpush.msra.mxu0 %v162
    %v164 = vand.u32 %v17, 4294901760
    %v165 = vsub.f32 %v17, %v164
    %v166 = vand.u32 %v165, 4294901760
    %v167 = vsub.f32 %v165, %v166
    %v168 = vand.u32 %v167, 4294901760
    %169 = vmatpush.msra.mxu0 %v168
    %v170 = vand.u32 %v16, 4294901760
    %171 = vmatmul.f32.gmra.mxu0 %v170
    %v172 = vpop.f32.mrf.mxu0
    %v173 = vadd.f32 %v72, %v172
    %174 = vdwg.mxu0
    %v175 = vand.u32 %v32, 4294901760
    %v176 = vsub.f32 %v32, %v175
    %177 = vmatpush.msra.mxu0 %v176
    %v178 = vand.u32 %v31, 4294901760
    %v179 = vsub.f32 %v31, %v178
    %180 = vmatpush.msra.mxu0 %v179
    %v181 = vand.u32 %v30, 4294901760
    %v182 = vsub.f32 %v30, %v181
    %183 = vmatpush.msra.mxu0 %v182
    %v184 = vand.u32 %v29, 4294901760
    %v185 = vsub.f32 %v29, %v184
    %186 = vmatpush.msra.mxu0 %v185
    %v187 = vand.u32 %v28, 4294901760
    %v188 = vsub.f32 %v28, %v187
    %189 = vmatpush.msra.mxu0 %v188
    %v190 = vand.u32 %v27, 4294901760
    %v191 = vsub.f32 %v27, %v190
    %192 = vmatpush.msra.mxu0 %v191
    %v193 = vand.u32 %v26, 4294901760
    %v194 = vsub.f32 %v26, %v193
    %195 = vmatpush.msra.mxu0 %v194
    %v196 = vand.u32 %v25, 4294901760
    %v197 = vsub.f32 %v25, %v196
    %198 = vmatpush.msra.mxu0 %v197
    %v199 = vand.u32 %v24, 4294901760
    %v200 = vsub.f32 %v24, %v199
    %201 = vmatpush.msra.mxu0 %v200
    %v202 = vand.u32 %v23, 4294901760
    %v203 = vsub.f32 %v23, %v202
    %204 = vmatpush.msra.mxu0 %v203
    %v205 = vand.u32 %v22, 4294901760
    %v206 = vsub.f32 %v22, %v205
    %207 = vmatpush.msra.mxu0 %v206
    %v208 = vand.u32 %v21, 4294901760
    %v209 = vsub.f32 %v21, %v208
    %210 = vmatpush.msra.mxu0 %v209
    %v211 = vand.u32 %v20, 4294901760
    %v212 = vsub.f32 %v20, %v211
    %213 = vmatpush.msra.mxu0 %v212
    %v214 = vand.u32 %v19, 4294901760
    %v215 = vsub.f32 %v19, %v214
    %216 = vmatpush.msra.mxu0 %v215
    %v217 = vand.u32 %v18, 4294901760
    %v218 = vsub.f32 %v18, %v217
    %219 = vmatpush.msra.mxu0 %v218
    %v220 = vand.u32 %v17, 4294901760
    %v221 = vsub.f32 %v17, %v220
    %222 = vmatpush.msra.mxu0 %v221
    %v223 = vand.u32 %v16, 4294901760
    %v224 = vsub.f32 %v16, %v223
    %225 = vmatmul.f32.gmra.mxu0 %v224
    %v226 = vpop.f32.mrf.mxu0
    %v227 = vadd.f32 %v173, %v226
    %228 = vdwg.mxu0
    %v229 = vand.u32 %v32, 4294901760
    %230 = vmatpush.msra.mxu0 %v229
    %v231 = vand.u32 %v31, 4294901760
    %232 = vmatpush.msra.mxu0 %v231
    %v233 = vand.u32 %v30, 4294901760
    %234 = vmatpush.msra.mxu0 %v233
    %v235 = vand.u32 %v29, 4294901760
    %236 = vmatpush.msra.mxu0 %v235
    %v237 = vand.u32 %v28, 4294901760
    %238 = vmatpush.msra.mxu0 %v237
    %v239 = vand.u32 %v27, 4294901760
    %240 = vmatpush.msra.mxu0 %v239
    %v241 = vand.u32 %v26, 4294901760
    %242 = vmatpush.msra.mxu0 %v241
    %v243 = vand.u32 %v25, 4294901760
    %244 = vmatpush.msra.mxu0 %v243
    %v245 = vand.u32 %v24, 4294901760
    %246 = vmatpush.msra.mxu0 %v245
    %v247 = vand.u32 %v23, 4294901760
    %248 = vmatpush.msra.mxu0 %v247
    %v249 = vand.u32 %v22, 4294901760
    %250 = vmatpush.msra.mxu0 %v249
    %v251 = vand.u32 %v21, 4294901760
    %252 = vmatpush.msra.mxu0 %v251
    %v253 = vand.u32 %v20, 4294901760
    %254 = vmatpush.msra.mxu0 %v253
    %v255 = vand.u32 %v19, 4294901760
    %256 = vmatpush.msra.mxu0 %v255
    %v257 = vand.u32 %v18, 4294901760
    %258 = vmatpush.msra.mxu0 %v257
    %v259 = vand.u32 %v17, 4294901760
    %260 = vmatpush.msra.mxu0 %v259
    %v261 = vand.u32 %v16, 4294901760
    %v262 = vsub.f32 %v16, %v261
    %v263 = vand.u32 %v262, 4294901760
    %264 = vmatmul.f32.gmra.mxu0 %v263
    %v265 = vpop.f32.mrf.mxu0
    %v266 = vadd.f32 %v227, %v265
    %267 = vdwg.mxu0
    %v268 = vand.u32 %v32, 4294901760
    %v269 = vsub.f32 %v32, %v268
    %v270 = vand.u32 %v269, 4294901760
    %271 = vmatpush.msra.mxu0 %v270
    %v272 = vand.u32 %v31, 4294901760
    %v273 = vsub.f32 %v31, %v272
    %v274 = vand.u32 %v273, 4294901760
    %275 = vmatpush.msra.mxu0 %v274
    %v276 = vand.u32 %v30, 4294901760
    %v277 = vsub.f32 %v30, %v276
    %v278 = vand.u32 %v277, 4294901760
    %279 = vmatpush.msra.mxu0 %v278
    %v280 = vand.u32 %v29, 4294901760
    %v281 = vsub.f32 %v29, %v280
    %v282 = vand.u32 %v281, 4294901760
    %283 = vmatpush.msra.mxu0 %v282
    %v284 = vand.u32 %v28, 4294901760
    %v285 = vsub.f32 %v28, %v284
    %v286 = vand.u32 %v285, 4294901760
    %287 = vmatpush.msra.mxu0 %v286
    %v288 = vand.u32 %v27, 4294901760
    %v289 = vsub.f32 %v27, %v288
    %v290 = vand.u32 %v289, 4294901760
    %291 = vmatpush.msra.mxu0 %v290
    %v292 = vand.u32 %v26, 4294901760
    %v293 = vsub.f32 %v26, %v292
    %v294 = vand.u32 %v293, 4294901760
    %295 = vmatpush.msra.mxu0 %v294
    %v296 = vand.u32 %v25, 4294901760
    %v297 = vsub.f32 %v25, %v296
    %v298 = vand.u32 %v297, 4294901760
    %299 = vmatpush.msra.mxu0 %v298
    %v300 = vand.u32 %v24, 4294901760
    %v301 = vsub.f32 %v24, %v300
    %v302 = vand.u32 %v301, 4294901760
    %303 = vmatpush.msra.mxu0 %v302
    %v304 = vand.u32 %v23, 4294901760
    %v305 = vsub.f32 %v23, %v304
    %v306 = vand.u32 %v305, 4294901760
    %307 = vmatpush.msra.mxu0 %v306
    %v308 = vand.u32 %v22, 4294901760
    %v309 = vsub.f32 %v22, %v308
    %v310 = vand.u32 %v309, 4294901760
    %311 = vmatpush.msra.mxu0 %v310
    %v312 = vand.u32 %v21, 4294901760
    %v313 = vsub.f32 %v21, %v312
    %v314 = vand.u32 %v313, 4294901760
    %315 = vmatpush.msra.mxu0 %v314
    %v316 = vand.u32 %v20, 4294901760
    %v317 = vsub.f32 %v20, %v316
    %v318 = vand.u32 %v317, 4294901760
    %319 = vmatpush.msra.mxu0 %v318
    %v320 = vand.u32 %v19, 4294901760
    %v321 = vsub.f32 %v19, %v320
    %v322 = vand.u32 %v321, 4294901760
    %323 = vmatpush.msra.mxu0 %v322
    %v324 = vand.u32 %v18, 4294901760
    %v325 = vsub.f32 %v18, %v324
    %v326 = vand.u32 %v325, 4294901760
    %327 = vmatpush.msra.mxu0 %v326
    %v328 = vand.u32 %v17, 4294901760
    %v329 = vsub.f32 %v17, %v328
    %v330 = vand.u32 %v329, 4294901760
    %331 = vmatpush.msra.mxu0 %v330
    %v332 = vand.u32 %v16, 4294901760
    %333 = vmatmul.f32.gmra.mxu0 %v332
    %v334 = vpop.f32.mrf.mxu0
    %v335 = vadd.f32 %v266, %v334
    %336 = vdwg.mxu0
    %v337 = vand.u32 %v32, 4294901760
    %338 = vmatpush.msra.mxu0 %v337
    %v339 = vand.u32 %v31, 4294901760
    %340 = vmatpush.msra.mxu0 %v339
    %v341 = vand.u32 %v30, 4294901760
    %342 = vmatpush.msra.mxu0 %v341
    %v343 = vand.u32 %v29, 4294901760
    %344 = vmatpush.msra.mxu0 %v343
    %v345 = vand.u32 %v28, 4294901760
    %346 = vmatpush.msra.mxu0 %v345
    %v347 = vand.u32 %v27, 4294901760
    %348 = vmatpush.msra.mxu0 %v347
    %v349 = vand.u32 %v26, 4294901760
    %350 = vmatpush.msra.mxu0 %v349
    %v351 = vand.u32 %v25, 4294901760
    %352 = vmatpush.msra.mxu0 %v351
    %v353 = vand.u32 %v24, 4294901760
    %354 = vmatpush.msra.mxu0 %v353
    %v355 = vand.u32 %v23, 4294901760
    %356 = vmatpush.msra.mxu0 %v355
    %v357 = vand.u32 %v22, 4294901760
    %358 = vmatpush.msra.mxu0 %v357
    %v359 = vand.u32 %v21, 4294901760
    %360 = vmatpush.msra.mxu0 %v359
    %v361 = vand.u32 %v20, 4294901760
    %362 = vmatpush.msra.mxu0 %v361
    %v363 = vand.u32 %v19, 4294901760
    %364 = vmatpush.msra.mxu0 %v363
    %v365 = vand.u32 %v18, 4294901760
    %366 = vmatpush.msra.mxu0 %v365
    %v367 = vand.u32 %v17, 4294901760
    %368 = vmatpush.msra.mxu0 %v367
    %v369 = vand.u32 %v16, 4294901760
    %370 = vmatmul.f32.gmra.mxu0 %v369
    %v371 = vpop.f32.mrf.mxu0
    %v372 = vadd.f32 %v335, %v371
    %373 = vdwg.mxu0
    %vm374 = vcmask 25600
    %375 = vst.msk [vmem:[#allocation3] sm:$0x3] %vm374, %v372
    // Predicated region
    $region14: #{tpu_custom_call.1} parent=1 // pred_check
      _
    $region15: #{tpu_custom_call.1} parent=1 // pred_check_branch
      %377 = sbr.rel (0) target = $region17
    $region16: #{tpu_custom_call.1} parent=1 // pred_region
      %379 = vsyncadd [#allocation4], 0
      %s381 = sshll.u32 [#allocation3], 4
      %s382 = int_to_ptr.vmem [resolvable:$true] %s381
      %s383 = sshll.u32 %s3, 4
      %s384 = int_to_ptr.hbm [resolvable:$true] %s383
      %386 = dma.vmem_to_hbm [thread:$0]  %s382, 32, %s384, [#allocation4]
    $region17: #{tpu_custom_call.1} parent=1 // pred_fallthru
      _
    // Predicated region
    $region18: #{tpu_custom_call.1} parent=1 // pred_check
      _
    $region19: #{tpu_custom_call.1} parent=1 // pred_check_branch
      %388 = sbr.rel (0) target = $region21
    $region20: #{tpu_custom_call.1} parent=1 // pred_region
      %390 = dma.done [#allocation4], 32
    $region21: #{tpu_custom_call.1} parent=1 // pred_fallthru
      _
    %391 = vsyncpa [#allocation4], 1

</llo_original>
